<compile_context>
chip_gen: v6e
topology: v6e:2x2x1
jax: 0.10.0
libtpu: 0.0.40
codegen_flags: <defaults>
</compile_context>

<pallas_src>
import jax
import jax.numpy as jnp
from jax.experimental import pallas as pl
from jax.experimental.pallas import tpu as pltpu


_LANE = 128          # TPU vreg lane width; lane-dense last dim.
_TILE_ROWS = 4096    # 4096 * 128 * 4 B = 2 MiB per f32 buffer per tile.


def _identity_copy_kernel(x_ref, o_ref):
    # Straight VMEM tile copy: one vld + one vst per vreg, nothing else.
    o_ref[...] = x_ref[...]


def no_positional_encoding(x, time_padded=None):
    """Forward pass of NoPositionalEncoding: returns x unchanged.

    Per the performance review, the identity is expressed directly in JAX
    (zero launch overhead, no fusion barrier, no hidden copy).  Use
    `no_positional_encoding_pallas` only if a freshly materialized output
    buffer is explicitly required.
    """
    del time_padded  # unused, as in the reference module
    return x


def no_positional_encoding_pallas(x, time_padded=None):
    """Explicit Pallas identity (materializing copy through VMEM).

    Lane-dense tiled copy; produces a new buffer with identical values.
    """
    del time_padded
    n = x.size
    itemsize = jnp.dtype(x.dtype).itemsize

    if n % _LANE != 0:
        # TODO(synk): ragged/pad path for sizes that are not a multiple of 128;
        # a single full-array block keeps it correct (masked stores) for small x.
        return pl.pallas_call(
            _identity_copy_kernel,
            out_shape=jax.ShapeDtypeStruct(x.shape, x.dtype),
            cost_estimate=pl.CostEstimate(
                flops=0, transcendentals=0, bytes_accessed=2 * n * itemsize),
        )(x)

    rows = n // _LANE
    flat = x.reshape(rows, _LANE)

    if rows <= _TILE_ROWS:
        # Single block equal to the full array dims (exempt from the (8,128)
        # divisibility rule), no grid-step overhead.
        block_rows = rows
        grid = (1,)
    else:
        # Multiple of 8 sublanes; edge block is padded by Pallas automatically.
        block_rows = _TILE_ROWS
        grid = (pl.cdiv(rows, block_rows),)

    out_flat = pl.pallas_call(
        _identity_copy_kernel,
        out_shape=jax.ShapeDtypeStruct((rows, _LANE), x.dtype),
        grid=grid,
        in_specs=[pl.BlockSpec((block_rows, _LANE), lambda i: (i, 0))],
        out_specs=pl.BlockSpec((block_rows, _LANE), lambda i: (i, 0)),
        compiler_params=pltpu.CompilerParams(
            dimension_semantics=("parallel",)),
        cost_estimate=pl.CostEstimate(
            flops=0, transcendentals=0, bytes_accessed=2 * n * itemsize),
    )(flat)
    return out_flat.reshape(x.shape)


if __name__ == "__main__":
    key = jax.random.PRNGKey(0)
    seq_len, batch, embed_dim = 8, 2, 32
    x = jax.random.normal(key, (seq_len, batch, embed_dim), dtype=jnp.float32)

    # Primary (zero-cost) path, matching the module's forward semantics.
    y = no_positional_encoding(x)
    y = jax.block_until_ready(y)
    assert y.shape == x.shape, (y.shape, x.shape)
    assert y.dtype == x.dtype, (y.dtype, x.dtype)
    assert bool(jnp.all(y == x)), "identity mismatch (direct path)"

    # Explicit Pallas path (lane-dense tiled copy), exercised for kernel parity.
    y2 = no_positional_encoding_pallas(x)
    y2 = jax.block_until_ready(y2)
    assert y2.shape == x.shape, (y2.shape, x.shape)
    assert y2.dtype == x.dtype, (y2.dtype, x.dtype)
    assert bool(jnp.all(y2 == x)), "identity mismatch (pallas path)"

    print("KERNEL_OK")
</pallas_src>

<mosaic_0001>
module attributes {stable_mosaic.version = 11 : i64} {
  func.func @_identity_copy_kernel(%arg0: i32, %arg1: memref<4x128xf32, #tpu.memory_space<vmem>>, %arg2: memref<4x128xf32, #tpu.memory_space<vmem>>) attributes {dimension_semantics = [#tpu.dimension_semantics<parallel>], iteration_bounds = array<i64: 1>, scalar_prefetch = 0 : i64, scratch_operands = 0 : i64, tpu.core_type = #tpu.core_type<tc>, window_params = [{transform_indices = @transform_0, window_bounds = array<i64: 4, 128>}, {transform_indices = @transform_1, window_bounds = array<i64: 4, 128>}]} {
    %c0 = arith.constant 0 : index
    %c0_0 = arith.constant 0 : index
    %0 = vector.load %arg1[%c0, %c0_0] : memref<4x128xf32, #tpu.memory_space<vmem>>, vector<4x128xf32>
    %c0_1 = arith.constant 0 : index
    %c0_2 = arith.constant 0 : index
    %1 = vector.load %arg2[%c0_1, %c0_2] : memref<4x128xf32, #tpu.memory_space<vmem>>, vector<4x128xf32>
    tpu.vector_store %arg2[%c0_1, %c0_2], %0 {strides = array<i32>} : memref<4x128xf32, #tpu.memory_space<vmem>>, vector<4x128xf32>,
    return
  }
  func.func @transform_0(%arg0: i32) -> (i32, i32) {
    %c0_i32 = arith.constant 0 : i32
    %c0_i32_0 = arith.constant 0 : i32
    return %arg0, %c0_i32 : i32, i32
  }
  func.func @transform_1(%arg0: i32) -> (i32, i32) {
    %c0_i32 = arith.constant 0 : i32
    %c0_i32_0 = arith.constant 0 : i32
    return %arg0, %c0_i32 : i32, i32
  }
}

</mosaic_0001>

<llo_original>
// kernel: tpu_custom_call.1
$region0: #{tpu_custom_call.1}
  #allocation0 [shape = 'u32[]', space=smem, size = 0x4, offset = 0x4, fixed_abs, tag = 'smem constant byte address 0x4 - core index']
  #allocation1 [shape = 'u32[144,128]{1,0:T(1,128)}', space=vmem, size = 0x12000, scoped, tag = 'internal scratch']
  %s0 = inlined_call_operand.hbm [shape: f32[4,128], index: 0, kind: input, shape index: {}]
  %s1 = inlined_call_operand.hbm [shape: f32[4,128], index: 1, kind: output, shape index: {}]
  %s2 = sld [smem:[#allocation0]]
  $region18: #{tpu_custom_call.1} parent=0
    _
  %s4 = ssub.s32 1, %s2
  %s5 = scalar_select 0, %s4, %s2
  $region1: #{tpu_custom_call.1} parent=0
    #allocation2 [shape = 'u8[2048]{0}', space=vmem, size = 0x800, scoped, tag = 'input window, operand 0, single buffered']
    #allocation3 [shape = 's32[1]{0}', space=sflag, size = 0x4, scoped, tag = 'scoped memory for tpu_custom_call.1']
    #allocation4 [shape = 's32[1]{0}', space=sflag, size = 0x4, scoped, tag = 'scoped memory for tpu_custom_call.1']
    #allocation5 [shape = 'u8[2048]{0}', space=vmem, size = 0x800, scoped, tag = 'output window, operand 0, single buffered']
    %6 = vsyncpa [#allocation3], 0
    %7 = vsyncpa [#allocation4], 0
    // Predicated region
    $region2: #{tpu_custom_call.1} parent=1 // pred_check
      _
    $region3: #{tpu_custom_call.1} parent=1 // pred_check_branch
      %9 = sbr.rel (0) target = $region5
    $region4: #{tpu_custom_call.1} parent=1 // pred_region
      %s11 = ssub.s32 64, 64
      %12 = vsyncadd [#allocation3], %s11
      %s14 = sshll.u32 [#allocation2], 4
      %s15 = int_to_ptr.vmem [resolvable:$true] %s14
      %17 = dma.hbm_to_vmem [thread:$0]  %s0, 64, %s15, [#allocation3]
    $region5: #{tpu_custom_call.1} parent=1 // pred_fallthru
      _
    // Predicated region
    $region6: #{tpu_custom_call.1} parent=1 // pred_check
      _
    $region7: #{tpu_custom_call.1} parent=1 // pred_check_branch
      %19 = sbr.rel (0) target = $region9
    $region8: #{tpu_custom_call.1} parent=1 // pred_region
      %20 = dma.done [#allocation3], 64
    $region9: #{tpu_custom_call.1} parent=1 // pred_fallthru
      _
    %v21 = vld [vmem:[#allocation2] sm:$0xf]
    %22 = vst [vmem:[#allocation5] sm:$0xf] %v21
    // Predicated region
    $region10: #{tpu_custom_call.1} parent=1 // pred_check
      _
    $region11: #{tpu_custom_call.1} parent=1 // pred_check_branch
      %24 = sbr.rel (0) target = $region13
    $region12: #{tpu_custom_call.1} parent=1 // pred_region
      %s26 = ssub.s32 64, 64
      %27 = vsyncadd [#allocation4], %s26
      %s29 = sshll.u32 [#allocation5], 4
      %s30 = int_to_ptr.vmem [resolvable:$true] %s29
      %32 = dma.vmem_to_hbm [thread:$0]  %s30, 64, %s1, [#allocation4]
    $region13: #{tpu_custom_call.1} parent=1 // pred_fallthru
      _
    // Predicated region
    $region14: #{tpu_custom_call.1} parent=1 // pred_check
      _
    $region15: #{tpu_custom_call.1} parent=1 // pred_check_branch
      %34 = sbr.rel (0) target = $region17
    $region16: #{tpu_custom_call.1} parent=1 // pred_region
      %35 = dma.done [#allocation4], 64
    $region17: #{tpu_custom_call.1} parent=1 // pred_fallthru
      _
    %36 = vsyncpa [#allocation3], 1
    %37 = vsyncpa [#allocation4], 1

</llo_original>
